<compile_context>
chip_gen: v6e
topology: v6e:2x2x1
jax: 0.10.0
libtpu: 0.0.40
codegen_flags: <defaults>
</compile_context>

<pallas_src>
import jax
import jax.numpy as jnp
from jax.experimental import pallas as pl
from jax.experimental.pallas import tpu as pltpu


def _round_up(a, m):
    return (a + m - 1) // m * m


def _pick_tile(dim, preferred, quantum):
    """Largest multiple of `quantum` <= preferred that divides `dim`.

    `dim` is already a multiple of `quantum`, so this always terminates."""
    t = max(quantum, (min(preferred, dim) // quantum) * quantum)
    while dim % t != 0:
        t -= quantum
    return t


def _residual_linear_kernel(x_ref, w_ref, b_ref, xres_ref, o_ref, acc_ref):
    # Grid: (i over M-tiles [parallel], j over N-tiles [parallel], k over K [arbitrary])
    # x_ref    : (tm, tk) bf16      activation K-slice
    # w_ref    : (tk, tn) bf16      weight tile
    # b_ref    : (1,  tn) f32       bias tile
    # xres_ref : (tm, tn) f32       residual input, output-aligned
    # o_ref    : (tm, tn)           output tile (resident across k)
    # acc_ref  : (tm, tn) f32 VMEM  accumulator scratch
    k = pl.program_id(2)

    @pl.when(k == 0)
    def _():
        # Initialize accumulator with the broadcast bias (avoids a separate
        # bias pass / per-K rebroadcast).
        acc_ref[...] = jnp.broadcast_to(b_ref[...], acc_ref.shape).astype(jnp.float32)

    acc_ref[...] += jnp.dot(
        x_ref[...], w_ref[...], preferred_element_type=jnp.float32
    )

    @pl.when(k == pl.num_programs(2) - 1)
    def _():
        # Residual add (the Residual module) in f32, single cast at the store.
        o_ref[...] = (acc_ref[...] + xres_ref[...].astype(jnp.float32)).astype(
            o_ref.dtype
        )


def residual_linear(x, w, b, *, tm_pref=256, tn_pref=256, tk_pref=512):
    """Residual(Linear).forward(x) == x @ w + b + x, fused in one Pallas kernel.

    x : (B, S, H) float32
    w : (H, H)    float32  (x @ w convention)
    b : (H,)      float32
    """
    B, S, H = x.shape
    h_in, h_out = w.shape
    assert h_in == H and h_out == H, "Residual fusion requires a square Linear"

    M = B * S
    Hp = _round_up(H, 128)                    # lane-align hidden dim
    tm = min(tm_pref, _round_up(M, 8))        # multiple of 8 (sublane)
    Mp = _round_up(M, tm)
    tn = _pick_tile(Hp, tn_pref, 128)         # multiples of 128 (lane / MXU)
    tk = _pick_tile(Hp, tk_pref, 128)

    # Zero-pad to tiled shapes (padded rows/cols contribute exactly zero).
    x2 = x.reshape(M, H)
    x_pad = jnp.pad(x2, ((0, Mp - M), (0, Hp - H)))
    w_pad = jnp.pad(w, ((0, Hp - H), (0, Hp - H)))
    b_pad = jnp.pad(b, (0, Hp - H)).reshape(1, Hp).astype(jnp.float32)

    # bf16 operands for the MXU; residual path stays f32.
    x_bf16 = x_pad.astype(jnp.bfloat16)
    w_bf16 = w_pad.astype(jnp.bfloat16)

    grid = (Mp // tm, Hp // tn, Hp // tk)

    out_pad = pl.pallas_call(
        _residual_linear_kernel,
        out_shape=jax.ShapeDtypeStruct((Mp, Hp), x.dtype),
        grid_spec=pltpu.PrefetchScalarGridSpec(
            num_scalar_prefetch=0,
            grid=grid,
            in_specs=[
                pl.BlockSpec((tm, tk), lambda i, j, k: (i, k)),   # x (bf16)
                pl.BlockSpec((tk, tn), lambda i, j, k: (k, j)),   # W (bf16)
                pl.BlockSpec((1, tn), lambda i, j, k: (0, j)),    # bias (f32)
                pl.BlockSpec((tm, tn), lambda i, j, k: (i, j)),   # residual x (f32)
            ],
            out_specs=pl.BlockSpec((tm, tn), lambda i, j, k: (i, j)),
            scratch_shapes=[pltpu.VMEM((tm, tn), jnp.float32)],
        ),
        compiler_params=pltpu.CompilerParams(
            dimension_semantics=("parallel", "parallel", "arbitrary"),
        ),
    )(x_bf16, w_bf16, b_pad, x_pad)

    return out_pad[:M, :H].reshape(B, S, H)


def residual_linear_ref(x, w, b):
    # Pure-JAX reference (f32): Residual(Linear).forward(x) == x @ w + b + x
    return jnp.einsum("bsh,hk->bsk", x, w) + b + x


if __name__ == "__main__":
    key = jax.random.PRNGKey(0)
    kx, kw, kb = jax.random.split(key, 3)

    B, S, H = 2, 8, 32
    x = jax.random.normal(kx, (B, S, H), dtype=jnp.float32)
    # Deterministic synthetic parameters for fn = Linear(H, H)
    w = jax.random.normal(kw, (H, H), dtype=jnp.float32) * 0.05
    b = jax.random.normal(kb, (H,), dtype=jnp.float32) * 0.05

    out = residual_linear(x, w, b)
    out = jax.block_until_ready(out)

    ref = residual_linear_ref(x, w, b)
    assert out.shape == (B, S, H)
    # bf16 MXU operands with f32 accumulation -> compare at bf16-level tolerance.
    assert jnp.allclose(out, ref, atol=2e-2, rtol=2e-2), "mismatch vs reference"

    print("KERNEL_OK")
</pallas_src>

<mosaic_0001>
module attributes {stable_mosaic.version = 11 : i64} {
  func.func @_residual_linear_kernel(%arg0: i32, %arg1: i32, %arg2: i32, %arg3: memref<16x128xbf16, #tpu.memory_space<vmem>>, %arg4: memref<128x128xbf16, #tpu.memory_space<vmem>>, %arg5: memref<1x128xf32, #tpu.memory_space<vmem>>, %arg6: memref<16x128xf32, #tpu.memory_space<vmem>>, %arg7: memref<16x128xf32, #tpu.memory_space<vmem>>, %arg8: memref<16x128xf32, #tpu.memory_space<vmem>>) attributes {dimension_semantics = [#tpu.dimension_semantics<parallel>, #tpu.dimension_semantics<parallel>, #tpu.dimension_semantics<arbitrary>], iteration_bounds = array<i64: 1, 1, 1>, scalar_prefetch = 0 : i64, scratch_operands = 1 : i64, tpu.core_type = #tpu.core_type<tc>, window_params = [{transform_indices = @transform_0, window_bounds = array<i64: 16, 128>}, {transform_indices = @transform_1, window_bounds = array<i64: 128, 128>}, {transform_indices = @transform_2, window_bounds = array<i64: 1, 128>}, {transform_indices = @transform_3, window_bounds = array<i64: 16, 128>}, {transform_indices = @transform_4, window_bounds = array<i64: 16, 128>}]} {
    %c0_i32 = arith.constant 0 : i32
    %0 = arith.cmpi eq, %arg2, %c0_i32 : i32
    %1 = arith.extui %0 : i1 to i32
    %c0_i32_0 = arith.constant 0 : i32
    %2 = arith.cmpi ne, %1, %c0_i32_0 : i32
    scf.if %2 {
      %c0_10 = arith.constant 0 : index
      %c0_11 = arith.constant 0 : index
      %12 = vector.load %arg5[%c0_10, %c0_11] : memref<1x128xf32, #tpu.memory_space<vmem>>, vector<1x128xf32>
      %13 = vector.shape_cast %12 : vector<1x128xf32> to vector<1x128xf32>
      %14 = vector.broadcast %13 : vector<1x128xf32> to vector<16x128xf32>
      %c0_12 = arith.constant 0 : index
      %c0_13 = arith.constant 0 : index
      %15 = vector.load %arg8[%c0_12, %c0_13] : memref<16x128xf32, #tpu.memory_space<vmem>>, vector<16x128xf32>
      tpu.vector_store %arg8[%c0_12, %c0_13], %14 {strides = array<i32>} : memref<16x128xf32, #tpu.memory_space<vmem>>, vector<16x128xf32>,
    } else {
    }
    %c0 = arith.constant 0 : index
    %c0_1 = arith.constant 0 : index
    %3 = vector.load %arg8[%c0, %c0_1] : memref<16x128xf32, #tpu.memory_space<vmem>>, vector<16x128xf32>
    %c0_2 = arith.constant 0 : index
    %c0_3 = arith.constant 0 : index
    %4 = vector.load %arg3[%c0_2, %c0_3] : memref<16x128xbf16, #tpu.memory_space<vmem>>, vector<16x128xbf16>
    %c0_4 = arith.constant 0 : index
    %c0_5 = arith.constant 0 : index
    %5 = vector.load %arg4[%c0_4, %c0_5] : memref<128x128xbf16, #tpu.memory_space<vmem>>, vector<128x128xbf16>
    %cst = arith.constant dense<0.000000e+00> : vector<16x128xf32>
    %6 = tpu.matmul %4, %5, %cst {dimension_numbers = #tpu.dot_dimension_numbers<[1], [0], [0], [1], [0, 0, 1, 1], [], []>} : vector<16x128xbf16>, vector<128x128xbf16>, vector<16x128xf32> -> vector<16x128xf32>
    %7 = arith.addf %3, %6 : vector<16x128xf32>
    %c0_6 = arith.constant 0 : index
    %c0_7 = arith.constant 0 : index
    %8 = vector.load %arg8[%c0_6, %c0_7] : memref<16x128xf32, #tpu.memory_space<vmem>>, vector<16x128xf32>
    tpu.vector_store %arg8[%c0_6, %c0_7], %7 {strides = array<i32>} : memref<16x128xf32, #tpu.memory_space<vmem>>, vector<16x128xf32>,
    %c0_i32_8 = arith.constant 0 : i32
    %9 = arith.cmpi eq, %arg2, %c0_i32_8 : i32
    %10 = arith.extui %9 : i1 to i32
    %c0_i32_9 = arith.constant 0 : i32
    %11 = arith.cmpi ne, %10, %c0_i32_9 : i32
    scf.if %11 {
      %c0_10 = arith.constant 0 : index
      %c0_11 = arith.constant 0 : index
      %12 = vector.load %arg8[%c0_10, %c0_11] : memref<16x128xf32, #tpu.memory_space<vmem>>, vector<16x128xf32>
      %c0_12 = arith.constant 0 : index
      %c0_13 = arith.constant 0 : index
      %13 = vector.load %arg6[%c0_12, %c0_13] : memref<16x128xf32, #tpu.memory_space<vmem>>, vector<16x128xf32>
      %14 = arith.addf %12, %13 : vector<16x128xf32>
      %c0_14 = arith.constant 0 : index
      %c0_15 = arith.constant 0 : index
      %15 = vector.load %arg7[%c0_14, %c0_15] : memref<16x128xf32, #tpu.memory_space<vmem>>, vector<16x128xf32>
      tpu.vector_store %arg7[%c0_14, %c0_15], %14 {strides = array<i32>} : memref<16x128xf32, #tpu.memory_space<vmem>>, vector<16x128xf32>,
    } else {
    }
    return
  }
  func.func @transform_0(%arg0: i32, %arg1: i32, %arg2: i32) -> (i32, i32) {
    %c0_i32 = arith.constant 0 : i32
    return %arg0, %arg2 : i32, i32
  }
  func.func @transform_1(%arg0: i32, %arg1: i32, %arg2: i32) -> (i32, i32) {
    %c0_i32 = arith.constant 0 : i32
    return %arg2, %arg1 : i32, i32
  }
  func.func @transform_2(%arg0: i32, %arg1: i32, %arg2: i32) -> (i32, i32) {
    %c0_i32 = arith.constant 0 : i32
    %c0_i32_0 = arith.constant 0 : i32
    return %c0_i32, %arg1 : i32, i32
  }
  func.func @transform_3(%arg0: i32, %arg1: i32, %arg2: i32) -> (i32, i32) {
    %c0_i32 = arith.constant 0 : i32
    return %arg0, %arg1 : i32, i32
  }
  func.func @transform_4(%arg0: i32, %arg1: i32, %arg2: i32) -> (i32, i32) {
    %c0_i32 = arith.constant 0 : i32
    return %arg0, %arg1 : i32, i32
  }
}

</mosaic_0001>

<llo_original>
// kernel: tpu_custom_call.1
$region0: #{tpu_custom_call.1}
  #allocation0 [shape = 'u32[]', space=smem, size = 0x4, offset = 0x4, fixed_abs, tag = 'smem constant byte address 0x4 - core index']
  #allocation1 [shape = 'u32[144,128]{1,0:T(1,128)}', space=vmem, size = 0x12000, scoped, tag = 'internal scratch']
  #allocation2 [shape = 'f32[16,128]{1,0:T(8,128)}', space=vmem, size = 0x2000, scoped, tag = 'scratch operand']
  %s0 = inlined_call_operand.hbm [shape: bf16[16,128], index: 0, kind: input, shape index: {}]
  %s1 = inlined_call_operand.hbm [shape: bf16[128,128], index: 1, kind: input, shape index: {}]
  %s2 = inlined_call_operand.vmem [shape: f32[1,128], index: 2, kind: input, shape index: {}]
  %s3 = inlined_call_operand.hbm [shape: f32[16,128], index: 3, kind: input, shape index: {}]
  %s4 = inlined_call_operand.hbm [shape: f32[16,128], index: 4, kind: output, shape index: {}]
  %s5 = sld [smem:[#allocation0]]
  $region46: #{tpu_custom_call.1} parent=0
    _
  %s7 = ssub.s32 1, %s5
  %s8 = scalar_select 0, %s7, %s5
  $region1: #{tpu_custom_call.1} parent=0
    #allocation3 [shape = 'u8[4096]{0}', space=vmem, size = 0x1000, scoped, tag = 'input window, operand 0, single buffered']
    #allocation4 [shape = 's32[1]{0}', space=sflag, size = 0x4, scoped, tag = 'scoped memory for tpu_custom_call.1']
    #allocation5 [shape = 's32[1]{0}', space=sflag, size = 0x4, scoped, tag = 'scoped memory for tpu_custom_call.1']
    #allocation6 [shape = 'u8[32768]{0}', space=vmem, size = 0x8000, scoped, tag = 'input window, operand 1, single buffered']
    #allocation7 [shape = 's32[1]{0}', space=sflag, size = 0x4, scoped, tag = 'scoped memory for tpu_custom_call.1']
    #allocation8 [shape = 'u8[8192]{0}', space=vmem, size = 0x2000, scoped, tag = 'input window, operand 3, single buffered']
    #allocation9 [shape = 'u8[8192]{0}', space=vmem, size = 0x2000, scoped, tag = 'output window, operand 0, single buffered']
    %9 = vsyncpa [#allocation4], 0
    %10 = vsyncpa [#allocation7], 0
    %11 = vsyncpa [#allocation5], 0
    // Predicated region
    $region2: #{tpu_custom_call.1} parent=1 // pred_check
      _
    $region3: #{tpu_custom_call.1} parent=1 // pred_check_branch
      %13 = sbr.rel (0) target = $region5
    $region4: #{tpu_custom_call.1} parent=1 // pred_region
      %s15 = ssub.s32 128, 128
      %16 = vsyncadd [#allocation4], %s15
      %s17 = sshll.u32 [#allocation3], 4
      %s18 = int_to_ptr.vmem [resolvable:$true] %s17
      %23 = dma.hbm_to_vmem [thread:$0]  %s0, 128, %s18, [#allocation4], 64, 64, 4
    $region5: #{tpu_custom_call.1} parent=1 // pred_fallthru
      _
    // Predicated region
    $region6: #{tpu_custom_call.1} parent=1 // pred_check
      _
    $region7: #{tpu_custom_call.1} parent=1 // pred_check_branch
      %25 = sbr.rel (0) target = $region9
    $region8: #{tpu_custom_call.1} parent=1 // pred_region
      %s27 = ssub.s32 1024, 1024
      %28 = vsyncadd [#allocation7], %s27
      %s29 = sshll.u32 [#allocation6], 4
      %s30 = int_to_ptr.vmem [resolvable:$true] %s29
      %35 = dma.hbm_to_vmem [thread:$0]  %s1, 1024, %s30, [#allocation7], 64, 64, 4
    $region9: #{tpu_custom_call.1} parent=1 // pred_fallthru
      _
    // Predicated region
    $region10: #{tpu_custom_call.1} parent=1 // pred_check
      _
    $region11: #{tpu_custom_call.1} parent=1 // pred_check_branch
      %37 = sbr.rel (0) target = $region13
    $region12: #{tpu_custom_call.1} parent=1 // pred_region
      _
    $region13: #{tpu_custom_call.1} parent=1 // pred_fallthru
      _
    // Predicated region
    $region14: #{tpu_custom_call.1} parent=1 // pred_check
      _
    $region15: #{tpu_custom_call.1} parent=1 // pred_check_branch
      %39 = sbr.rel (0) target = $region17
    $region16: #{tpu_custom_call.1} parent=1 // pred_region
      %s41 = ssub.s32 256, 256
      %42 = vsyncadd [#allocation7], %s41
      %s43 = sshll.u32 [#allocation8], 4
      %s44 = int_to_ptr.vmem [resolvable:$true] %s43
      %49 = dma.hbm_to_vmem [thread:$0]  %s3, 256, %s44, [#allocation7], 128, 128, 8
    $region17: #{tpu_custom_call.1} parent=1 // pred_fallthru
      _
    // Predicated region
    $region18: #{tpu_custom_call.1} parent=1 // pred_check
      _
    $region19: #{tpu_custom_call.1} parent=1 // pred_check_branch
      %51 = sbr.rel (0) target = $region21
    $region20: #{tpu_custom_call.1} parent=1 // pred_region
      %52 = dma.done [#allocation4], 128
    $region21: #{tpu_custom_call.1} parent=1 // pred_fallthru
      _
    // Predicated region
    $region22: #{tpu_custom_call.1} parent=1 // pred_check
      _
    $region23: #{tpu_custom_call.1} parent=1 // pred_check_branch
      %54 = sbr.rel (0) target = $region25
    $region24: #{tpu_custom_call.1} parent=1 // pred_region
      %55 = dma.done [#allocation7], 1024
    $region25: #{tpu_custom_call.1} parent=1 // pred_fallthru
      _
    // Predicated region
    $region26: #{tpu_custom_call.1} parent=1 // pred_check
      _
    $region27: #{tpu_custom_call.1} parent=1 // pred_check_branch
      %57 = sbr.rel (0) target = $region29
    $region28: #{tpu_custom_call.1} parent=1 // pred_region
      %58 = dma.done [#allocation7], 256
    $region29: #{tpu_custom_call.1} parent=1 // pred_fallthru
      _
    %p60 = scmp.eq.s32.totalorder 0, 0
    // Predicated region
    $region30: #{tpu_custom_call.1} parent=1 // pred_check
      %p61 = pneg %p60
    $region31: #{tpu_custom_call.1} parent=1 // pred_check_branch
      %63 = sbr.rel (%p61) target = $region33
    $region32: #{tpu_custom_call.1} parent=1 // pred_region
      %v64 = vld [vmem:[%s2] sm:$0x1]
      %v66 = vlaneseq
      %v67 = vshrl.u32 %v66, 7
      %v68 = vsub.s32 0, %v67
      %v69 = vrot.slane %v64, %v68
      %71 = vst [vmem:[#allocation2] sm:$0xff] %v69
      %72 = vst [vmem:[#allocation2 + $0x8] sm:$0xff] %v69
    $region33: #{tpu_custom_call.1} parent=1 // pred_fallthru
      _
    %v73 = vld [vmem:[#allocation2] sm:$0xff]
    %v74 = vld [vmem:[#allocation2 + $0x8] sm:$0xff]
    %v75 = vld [vmem:[#allocation3] sm:$0xf]
    %v76 = vld [vmem:[#allocation3 + $0x4] sm:$0xf]
    %v77 = vld [vmem:[#allocation6] sm:$0xf]
    %v78 = vld [vmem:[#allocation6 + $0x4] sm:$0xf]
    %v79 = vld [vmem:[#allocation6 + $0x8] sm:$0xf]
    %v80 = vld [vmem:[#allocation6 + $0xc] sm:$0xf]
    %v81 = vld [vmem:[#allocation6 + $0x10] sm:$0xf]
    %v82 = vld [vmem:[#allocation6 + $0x14] sm:$0xf]
    %v83 = vld [vmem:[#allocation6 + $0x18] sm:$0xf]
    %v84 = vld [vmem:[#allocation6 + $0x1c] sm:$0xf]
    %v85 = vld [vmem:[#allocation6 + $0x20] sm:$0xf]
    %v86 = vld [vmem:[#allocation6 + $0x24] sm:$0xf]
    %v87 = vld [vmem:[#allocation6 + $0x28] sm:$0xf]
    %v88 = vld [vmem:[#allocation6 + $0x2c] sm:$0xf]
    %v89 = vld [vmem:[#allocation6 + $0x30] sm:$0xf]
    %v90 = vld [vmem:[#allocation6 + $0x34] sm:$0xf]
    %v91 = vld [vmem:[#allocation6 + $0x38] sm:$0xf]
    %v92 = vld [vmem:[#allocation6 + $0x3c] sm:$0xf]
    %v95 = vunpack.c.l.b16 %v75
    %v96 = vunpack.c.l.b16 %v76
    %v97 = vpack.c.b16 %v96, %v95
    %v115 = vunpack.c.l.b16 %v77
    %v116 = vunpack.c.l.b16 %v78
    %v117 = vunpack.c.l.b16 %v79
    %v118 = vunpack.c.l.b16 %v80
    %v119 = vunpack.c.l.b16 %v81
    %v120 = vunpack.c.l.b16 %v82
    %v121 = vunpack.c.l.b16 %v83
    %v122 = vunpack.c.l.b16 %v84
    %v123 = vunpack.c.l.b16 %v85
    %v124 = vunpack.c.l.b16 %v86
    %v125 = vunpack.c.l.b16 %v87
    %v126 = vunpack.c.l.b16 %v88
    %v127 = vunpack.c.l.b16 %v89
    %v128 = vunpack.c.l.b16 %v90
    %v129 = vunpack.c.l.b16 %v91
    %v130 = vunpack.c.l.b16 %v92
    %v131 = vpack.c.b16 %v116, %v115
    %v132 = vpack.c.b16 %v118, %v117
    %v133 = vpack.c.b16 %v120, %v119
    %v134 = vpack.c.b16 %v122, %v121
    %v135 = vpack.c.b16 %v124, %v123
    %v136 = vpack.c.b16 %v126, %v125
    %v137 = vpack.c.b16 %v128, %v127
    %v138 = vpack.c.b16 %v130, %v129
    %147 = vmatprep.subr.bf16.mxu0 0
    %148 = vmatpush1.bf16.msra.mxu0 %v138
    %149 = vmatprep.subr.bf16.mxu0 0
    %150 = vmatpush1.bf16.msra.mxu0 %v137
    %151 = vmatprep.subr.bf16.mxu0 0
    %152 = vmatpush1.bf16.msra.mxu0 %v136
    %153 = vmatprep.subr.bf16.mxu0 0
    %154 = vmatpush1.bf16.msra.mxu0 %v135
    %155 = vmatprep.subr.bf16.mxu0 0
    %156 = vmatpush1.bf16.msra.mxu0 %v134
    %157 = vmatprep.subr.bf16.mxu0 0
    %158 = vmatpush1.bf16.msra.mxu0 %v133
    %159 = vmatprep.subr.bf16.mxu0 0
    %160 = vmatpush1.bf16.msra.mxu0 %v132
    %161 = vmatprep.subr.bf16.mxu0 0
    %162 = vmatpush1.bf16.msra.mxu0 %v131
    %163 = vmatprep.subr.bf16.mxu0 0
    %164 = vmatpush2.bf16.msra.mxu0 0
    %165 = vmatprep.subr.bf16.mxu0 0
    %166 = vmatpush2.bf16.msra.mxu0 0
    %167 = vmatprep.subr.bf16.mxu0 0
    %168 = vmatpush2.bf16.msra.mxu0 0
    %169 = vmatprep.subr.bf16.mxu0 0
    %170 = vmatpush2.bf16.msra.mxu0 0
    %171 = vmatprep.subr.bf16.mxu0 0
    %172 = vmatpush2.bf16.msra.mxu0 0
    %173 = vmatprep.subr.bf16.mxu0 0
    %174 = vmatpush2.bf16.msra.mxu0 0
    %175 = vmatprep.subr.bf16.mxu0 0
    %176 = vmatpush2.bf16.msra.mxu0 0
    %177 = vmatprep.subr.bf16.mxu0 0
    %178 = vmatpush2.bf16.msra.mxu0 0
    %179 = vmatprep.mubr.bf16.mxu0 0
    %180 = vmatmul.mubr.bf16.gmra.mxu0 %v97
    %v181 = vpop.f32.mrf.mxu0
    %v182 = vadd.f32 0.0, %v181
    %v183 = vpop.f32.mrf.mxu0
    %v184 = vpop.f32.mrf.mxu0
    %v185 = vadd.f32 0.0, %v184
    %v186 = vpop.f32.mrf.mxu0
    %187 = vdwg.mxu0
    %v188 = vadd.f32 %v73, %v182
    %v189 = vadd.f32 %v74, %v185
    %190 = vst [vmem:[#allocation2] sm:$0xff] %v188
    %191 = vst [vmem:[#allocation2 + $0x8] sm:$0xff] %v189
    // Predicated region
    $region34: #{tpu_custom_call.1} parent=1 // pred_check
      %p192 = pneg %p60
    $region35: #{tpu_custom_call.1} parent=1 // pred_check_branch
      %194 = sbr.rel (%p192) target = $region37
    $region36: #{tpu_custom_call.1} parent=1 // pred_region
      %v195 = vld [vmem:[#allocation2] sm:$0xff]
      %v196 = vld [vmem:[#allocation2 + $0x8] sm:$0xff]
      %v197 = vld [vmem:[#allocation8] sm:$0xff]
      %v198 = vld [vmem:[#allocation8 + $0x8] sm:$0xff]
      %v199 = vadd.f32 %v195, %v197
      %v200 = vadd.f32 %v196, %v198
      %201 = vst [vmem:[#allocation9] sm:$0xff] %v199
      %202 = vst [vmem:[#allocation9 + $0x8] sm:$0xff] %v200
    $region37: #{tpu_custom_call.1} parent=1 // pred_fallthru
      _
    // Predicated region
    $region38: #{tpu_custom_call.1} parent=1 // pred_check
      _
    $region39: #{tpu_custom_call.1} parent=1 // pred_check_branch
      %204 = sbr.rel (0) target = $region41
    $region40: #{tpu_custom_call.1} parent=1 // pred_region
      %s206 = ssub.s32 256, 256
      %207 = vsyncadd [#allocation5], %s206
      %s208 = sshll.u32 [#allocation9], 4
      %s209 = int_to_ptr.vmem [resolvable:$true] %s208
      %214 = dma.vmem_to_hbm [thread:$0]  %s209, 256, %s4, [#allocation5], 128, 128, 8
    $region41: #{tpu_custom_call.1} parent=1 // pred_fallthru
      _
    // Predicated region
    $region42: #{tpu_custom_call.1} parent=1 // pred_check
      _
    $region43: #{tpu_custom_call.1} parent=1 // pred_check_branch
      %216 = sbr.rel (0) target = $region45
    $region44: #{tpu_custom_call.1} parent=1 // pred_region
      %217 = dma.done [#allocation5], 256
    $region45: #{tpu_custom_call.1} parent=1 // pred_fallthru
      _
    %218 = vsyncpa [#allocation4], 1
    %219 = vsyncpa [#allocation7], 1
    %220 = vsyncpa [#allocation5], 1

</llo_original>
